<compile_context>
chip_gen: v5e
topology: v5e:2x2
jax: 0.10.0
libtpu: 0.0.40
codegen_flags: <defaults>
</compile_context>

<pallas_src>
import math
import jax
import jax.numpy as jnp
from jax.experimental import pallas as pl
from jax.experimental.pallas import tpu as pltpu


def _round_up(x, m):
    return ((x + m - 1) // m) * m


def _tpu_config():
    """Per-generation tile defaults and VMEM budget."""
    try:
        kind = jax.devices()[0].device_kind.lower()
    except Exception:
        kind = ""
    if "v5" in kind:
        # 128 MiB VMEM (scoped default only 16 MiB -> raise it), 4x128^2 MXU.
        return dict(tm=512, tk=1024, vmem=100 * 1024 * 1024, two_tiles=False)
    if "v6" in kind:
        # 128 MiB VMEM, 2x256 MXU, most HBM-bound generation -> biggest tm.
        return dict(tm=1024, tk=2048, vmem=100 * 1024 * 1024, two_tiles=False)
    if "7" in kind:
        # v7x: 64 MiB VMEM per TC, 2 TCs -> cap tm, keep >= 2 N tiles.
        return dict(tm=512, tk=2048, vmem=48 * 1024 * 1024, two_tiles=True)
    # Unknown: conservative middle ground.
    return dict(tm=512, tk=2048, vmem=64 * 1024 * 1024, two_tiles=False)


def _pick_tk(k, tk_default):
    """Prefer a tk (multiple of 128) that divides K exactly, so the N x K
    activation never goes through a host-side jnp.pad copy; fall back to
    padding when the exact divisor would be too small (grid-step overhead)."""
    k128 = _round_up(k, 128)
    tk_pad = min(tk_default, k128)
    if k % 128 == 0:
        best = 0
        for cand in range(128, min(tk_default, k) + 1, 128):
            if k % cand == 0:
                best = cand
        if best == tk_pad or best >= max(512, tk_pad // 4):
            return best
    return tk_pad


def two_mlp_head_kernel(x_ref, w6_ref, b6_ref, w7_ref, b7_ref, out_ref, acc_ref):
    k = pl.program_id(1)

    @pl.when(k == 0)
    def _():
        acc_ref[...] = jnp.zeros_like(acc_ref)

    # fc6 partial product for this K tile (MXU, fp32 accumulation).
    acc_ref[...] += jnp.dot(
        x_ref[...].astype(w6_ref.dtype), w6_ref[...],
        preferred_element_type=jnp.float32)

    # Finalize on the last K step: bias + ReLU, then fc7 (+ bias + ReLU).
    @pl.when(k == pl.num_programs(1) - 1)
    def _():
        h = jnp.maximum(acc_ref[...] + b6_ref[...], 0.0)
        y = jnp.dot(h.astype(w7_ref.dtype), w7_ref[...],
                    preferred_element_type=jnp.float32)
        y = jnp.maximum(y + b7_ref[...], 0.0)
        out_ref[...] = y.astype(out_ref.dtype)


def prepare_two_mlp_head_params(w6, b6, w7, b7, *,
                                compute_dtype=jnp.bfloat16, cfg=None):
    """One-time (init-time) weight prep: pick tk, K-pad W6, cast to the MXU
    compute dtype. Hoisted out of the per-call hot path so the largest weight
    is not re-read/re-written in f32 on every forward."""
    cfg = dict(cfg or _tpu_config())
    k, r = w6.shape
    tk = _pick_tk(k, cfg["tk"])
    k_pad = _round_up(k, tk)
    if k_pad != k:
        # Zero K-padding is matmul-neutral.
        w6 = jnp.pad(w6, ((0, k_pad - k), (0, 0)))
    w6 = w6.astype(compute_dtype)
    w7 = w7.astype(compute_dtype)
    # TODO(synk): v7x fp8 W6 path (per-output-column scale folded into the fp32
    # accumulator at the k==last finalize) would halve W6 bytes + 2x fc6 MXU.
    b6 = b6.reshape(1, r).astype(jnp.float32)
    b7 = b7.reshape(1, r).astype(jnp.float32)
    return dict(w6=w6, b6=b6, w7=w7, b7=b7, k=k, r=r, tk=tk, cfg=cfg)


def two_mlp_head_apply(x_nchw, params):
    """x_nchw: (N, C, H, W); returns (N, representation_size)."""
    cfg = params["cfg"]
    k, r, tk = params["k"], params["r"], params["tk"]
    w6, b6, w7, b7 = params["w6"], params["b6"], params["w7"], params["b7"]

    n = x_nchw.shape[0]
    assert math.prod(x_nchw.shape[1:]) == k, "flattened feature size mismatch"
    x2d = x_nchw.reshape(n, k)            # == torch.flatten(start_dim=1)

    # Sublane multiple depends on the activation dtype (bf16 min tile is 16).
    sublane = 16 if x2d.dtype == jnp.bfloat16 else 8
    n_r = _round_up(n, sublane)
    tm = min(cfg["tm"], n_r)
    # v7x: keep >= 2 N tiles (when there are enough rows) so both TCs get work.
    if cfg["two_tiles"] and tm == n_r and n_r >= 256:
        tm = _round_up((n_r + 1) // 2, sublane)
    n_pad = _round_up(n, tm)
    k_pad = w6.shape[0]

    if (n_pad != n) or (k_pad != k):
        # Only hit when tk does not divide K exactly or N isn't tile-aligned;
        # padded rows are sliced off below, padded K columns are zeros.
        x2d = jnp.pad(x2d, ((0, n_pad - n), (0, k_pad - k)))

    grid = (n_pad // tm, k_pad // tk)

    out = pl.pallas_call(
        two_mlp_head_kernel,
        out_shape=jax.ShapeDtypeStruct((n_pad, r), x_nchw.dtype),
        grid_spec=pltpu.PrefetchScalarGridSpec(
            num_scalar_prefetch=0,
            grid=grid,
            in_specs=[
                pl.BlockSpec((tm, tk), lambda i, kk: (i, kk)),   # x tile
                pl.BlockSpec((tk, r), lambda i, kk: (kk, 0)),    # W6 K-slab
                pl.BlockSpec((1, r), lambda i, kk: (0, 0)),      # b6 (resident)
                pl.BlockSpec((r, r), lambda i, kk: (0, 0)),      # W7 (resident)
                pl.BlockSpec((1, r), lambda i, kk: (0, 0)),      # b7 (resident)
            ],
            out_specs=pl.BlockSpec((tm, r), lambda i, kk: (i, 0)),
            scratch_shapes=[pltpu.VMEM((tm, r), jnp.float32)],
        ),
        compiler_params=pltpu.CompilerParams(
            dimension_semantics=("parallel", "arbitrary"),
            vmem_limit_bytes=cfg["vmem"],
        ),
    )(x2d, w6, b6, w7, b7)

    return out[:n]


def two_mlp_head(x_nchw, w6, b6, w7, b7, *, compute_dtype=jnp.bfloat16):
    """Convenience one-shot wrapper. For repeated calls, prepare params once
    with prepare_two_mlp_head_params() and reuse them via two_mlp_head_apply()."""
    params = prepare_two_mlp_head_params(w6, b6, w7, b7,
                                         compute_dtype=compute_dtype)
    return two_mlp_head_apply(x_nchw, params)


def _ref_forward(x_nchw, w6, b6, w7, b7):
    n = x_nchw.shape[0]
    x2d = x_nchw.reshape(n, -1)
    h = jnp.maximum(x2d @ w6 + b6, 0.0)
    return jnp.maximum(h @ w7 + b7, 0.0)


if __name__ == "__main__":
    # Small shapes consistent with the module: in_channels = C*H*W = 4*4*4 = 64,
    # representation_size = 128.
    N, C, H, W = 8, 4, 4, 4
    K = C * H * W
    R = 128

    key = jax.random.PRNGKey(0)
    kx, k6w, k6b, k7w, k7b = jax.random.split(key, 5)

    x = jax.random.normal(kx, (N, C, H, W), dtype=jnp.float32)
    # nn.Linear stores (out, in); we keep (in, out) so the kernel does x @ W.
    w6 = jax.random.normal(k6w, (K, R), dtype=jnp.float32) * 0.05
    b6 = jax.random.normal(k6b, (R,), dtype=jnp.float32) * 0.05
    w7 = jax.random.normal(k7w, (R, R), dtype=jnp.float32) * 0.05
    b7 = jax.random.normal(k7b, (R,), dtype=jnp.float32) * 0.05

    ref = _ref_forward(x, w6, b6, w7, b7)

    # fp32 MXU path: tight tolerance vs the fp32 reference.
    params_f32 = prepare_two_mlp_head_params(w6, b6, w7, b7,
                                             compute_dtype=jnp.float32)
    out_f32 = jax.block_until_ready(two_mlp_head_apply(x, params_f32))
    assert out_f32.shape == (N, R)
    assert jnp.allclose(out_f32, ref, atol=1e-4, rtol=1e-4)

    # Default bf16 MXU path (fp32 accumulation): looser tolerance. Reuse of the
    # prepared params across calls is the intended production pattern.
    params_bf16 = prepare_two_mlp_head_params(w6, b6, w7, b7,
                                              compute_dtype=jnp.bfloat16)
    out_bf16 = jax.block_until_ready(two_mlp_head_apply(x, params_bf16))
    out_bf16b = jax.block_until_ready(two_mlp_head_apply(x, params_bf16))
    assert out_bf16.shape == (N, R)
    assert jnp.allclose(out_bf16, ref, atol=5e-2, rtol=5e-2)
    assert jnp.allclose(out_bf16, out_bf16b)

    print("KERNEL_OK")
</pallas_src>

<mosaic_0001>
module attributes {stable_mosaic.version = 11 : i64} {
  func.func @two_mlp_head_kernel(%arg0: i32, %arg1: i32, %arg2: memref<8x128xf32, #tpu.memory_space<vmem>>, %arg3: memref<128x128xf32, #tpu.memory_space<vmem>>, %arg4: memref<1x128xf32, #tpu.memory_space<vmem>>, %arg5: memref<128x128xf32, #tpu.memory_space<vmem>>, %arg6: memref<1x128xf32, #tpu.memory_space<vmem>>, %arg7: memref<8x128xf32, #tpu.memory_space<vmem>>, %arg8: memref<8x128xf32, #tpu.memory_space<vmem>>) attributes {dimension_semantics = [#tpu.dimension_semantics<parallel>, #tpu.dimension_semantics<arbitrary>], iteration_bounds = array<i64: 1, 1>, scalar_prefetch = 0 : i64, scratch_operands = 1 : i64, tpu.core_type = #tpu.core_type<tc>, window_params = [{transform_indices = @transform_0, window_bounds = array<i64: 8, 128>}, {transform_indices = @transform_1, window_bounds = array<i64: 128, 128>}, {pipeline_mode = #tpu.pipeline_mode<synchronous>, transform_indices = @transform_2, window_bounds = array<i64: 1, 128>}, {pipeline_mode = #tpu.pipeline_mode<synchronous>, transform_indices = @transform_3, window_bounds = array<i64: 128, 128>}, {pipeline_mode = #tpu.pipeline_mode<synchronous>, transform_indices = @transform_4, window_bounds = array<i64: 1, 128>}, {transform_indices = @transform_5, window_bounds = array<i64: 8, 128>}]} {
    %c0_i32 = arith.constant 0 : i32
    %0 = arith.cmpi eq, %arg1, %c0_i32 : i32
    %1 = arith.extui %0 : i1 to i32
    %c0_i32_0 = arith.constant 0 : i32
    %2 = arith.cmpi ne, %1, %c0_i32_0 : i32
    scf.if %2 {
      %cst_10 = arith.constant 0.000000e+00 : f32
      %12 = vector.broadcast %cst_10 : f32 to vector<8x128xf32>
      %c0_11 = arith.constant 0 : index
      %c0_12 = arith.constant 0 : index
      %13 = vector.load %arg8[%c0_11, %c0_12] : memref<8x128xf32, #tpu.memory_space<vmem>>, vector<8x128xf32>
      tpu.vector_store %arg8[%c0_11, %c0_12], %12 {strides = array<i32>} : memref<8x128xf32, #tpu.memory_space<vmem>>, vector<8x128xf32>,
    } else {
    }
    %c0 = arith.constant 0 : index
    %c0_1 = arith.constant 0 : index
    %3 = vector.load %arg8[%c0, %c0_1] : memref<8x128xf32, #tpu.memory_space<vmem>>, vector<8x128xf32>
    %c0_2 = arith.constant 0 : index
    %c0_3 = arith.constant 0 : index
    %4 = vector.load %arg2[%c0_2, %c0_3] : memref<8x128xf32, #tpu.memory_space<vmem>>, vector<8x128xf32>
    %c0_4 = arith.constant 0 : index
    %c0_5 = arith.constant 0 : index
    %5 = vector.load %arg3[%c0_4, %c0_5] : memref<128x128xf32, #tpu.memory_space<vmem>>, vector<128x128xf32>
    %cst = arith.constant dense<0.000000e+00> : vector<8x128xf32>
    %6 = tpu.matmul %4, %5, %cst {dimension_numbers = #tpu.dot_dimension_numbers<[1], [0], [0], [1], [0, 0, 1, 1], [], []>} : vector<8x128xf32>, vector<128x128xf32>, vector<8x128xf32> -> vector<8x128xf32>
    %7 = arith.addf %3, %6 : vector<8x128xf32>
    %c0_6 = arith.constant 0 : index
    %c0_7 = arith.constant 0 : index
    %8 = vector.load %arg8[%c0_6, %c0_7] : memref<8x128xf32, #tpu.memory_space<vmem>>, vector<8x128xf32>
    tpu.vector_store %arg8[%c0_6, %c0_7], %7 {strides = array<i32>} : memref<8x128xf32, #tpu.memory_space<vmem>>, vector<8x128xf32>,
    %c0_i32_8 = arith.constant 0 : i32
    %9 = arith.cmpi eq, %arg1, %c0_i32_8 : i32
    %10 = arith.extui %9 : i1 to i32
    %c0_i32_9 = arith.constant 0 : i32
    %11 = arith.cmpi ne, %10, %c0_i32_9 : i32
    scf.if %11 {
      %c0_10 = arith.constant 0 : index
      %c0_11 = arith.constant 0 : index
      %12 = vector.load %arg8[%c0_10, %c0_11] : memref<8x128xf32, #tpu.memory_space<vmem>>, vector<8x128xf32>
      %c0_12 = arith.constant 0 : index
      %c0_13 = arith.constant 0 : index
      %13 = vector.load %arg4[%c0_12, %c0_13] : memref<1x128xf32, #tpu.memory_space<vmem>>, vector<1x128xf32>
      %14 = vector.broadcast %13 : vector<1x128xf32> to vector<8x128xf32>
      %15 = arith.addf %12, %14 : vector<8x128xf32>
      %cst_14 = arith.constant 0.000000e+00 : f32
      %16 = vector.broadcast %cst_14 : f32 to vector<8x128xf32>
      %17 = arith.maximumf %15, %16 : vector<8x128xf32>
      %c0_15 = arith.constant 0 : index
      %c0_16 = arith.constant 0 : index
      %18 = vector.load %arg5[%c0_15, %c0_16] : memref<128x128xf32, #tpu.memory_space<vmem>>, vector<128x128xf32>
      %cst_17 = arith.constant dense<0.000000e+00> : vector<8x128xf32>
      %19 = tpu.matmul %17, %18, %cst_17 {dimension_numbers = #tpu.dot_dimension_numbers<[1], [0], [0], [1], [0, 0, 1, 1], [], []>} : vector<8x128xf32>, vector<128x128xf32>, vector<8x128xf32> -> vector<8x128xf32>
      %c0_18 = arith.constant 0 : index
      %c0_19 = arith.constant 0 : index
      %20 = vector.load %arg6[%c0_18, %c0_19] : memref<1x128xf32, #tpu.memory_space<vmem>>, vector<1x128xf32>
      %21 = vector.broadcast %20 : vector<1x128xf32> to vector<8x128xf32>
      %22 = arith.addf %19, %21 : vector<8x128xf32>
      %cst_20 = arith.constant 0.000000e+00 : f32
      %23 = vector.broadcast %cst_20 : f32 to vector<8x128xf32>
      %24 = arith.maximumf %22, %23 : vector<8x128xf32>
      %c0_21 = arith.constant 0 : index
      %c0_22 = arith.constant 0 : index
      %25 = vector.load %arg7[%c0_21, %c0_22] : memref<8x128xf32, #tpu.memory_space<vmem>>, vector<8x128xf32>
      tpu.vector_store %arg7[%c0_21, %c0_22], %24 {strides = array<i32>} : memref<8x128xf32, #tpu.memory_space<vmem>>, vector<8x128xf32>,
    } else {
    }
    return
  }
  func.func @transform_0(%arg0: i32, %arg1: i32) -> (i32, i32) {
    %c0_i32 = arith.constant 0 : i32
    return %arg0, %arg1 : i32, i32
  }
  func.func @transform_1(%arg0: i32, %arg1: i32) -> (i32, i32) {
    %c0_i32 = arith.constant 0 : i32
    %c0_i32_0 = arith.constant 0 : i32
    return %arg1, %c0_i32 : i32, i32
  }
  func.func @transform_2(%arg0: i32, %arg1: i32) -> (i32, i32) {
    %c0_i32 = arith.constant 0 : i32
    %c0_i32_0 = arith.constant 0 : i32
    %c0_i32_1 = arith.constant 0 : i32
    return %c0_i32, %c0_i32_0 : i32, i32
  }
  func.func @transform_3(%arg0: i32, %arg1: i32) -> (i32, i32) {
    %c0_i32 = arith.constant 0 : i32
    %c0_i32_0 = arith.constant 0 : i32
    %c0_i32_1 = arith.constant 0 : i32
    return %c0_i32, %c0_i32_0 : i32, i32
  }
  func.func @transform_4(%arg0: i32, %arg1: i32) -> (i32, i32) {
    %c0_i32 = arith.constant 0 : i32
    %c0_i32_0 = arith.constant 0 : i32
    %c0_i32_1 = arith.constant 0 : i32
    return %c0_i32, %c0_i32_0 : i32, i32
  }
  func.func @transform_5(%arg0: i32, %arg1: i32) -> (i32, i32) {
    %c0_i32 = arith.constant 0 : i32
    %c0_i32_0 = arith.constant 0 : i32
    return %arg0, %c0_i32 : i32, i32
  }
}

</mosaic_0001>

<llo_original>
// kernel: tpu_custom_call.1
$region0: #{tpu_custom_call.1}
  #allocation0 [shape = 'u32[]', space=smem, size = 0x4, offset = 0x4, fixed_abs, tag = 'smem constant byte address 0x4 - core index']
  #allocation1 [shape = 'u32[72,128]{1,0:T(1,128)}', space=vmem, size = 0x9000, scoped, tag = 'internal scratch']
  #allocation2 [shape = 'f32[8,128]{1,0:T(8,128)}', space=vmem, size = 0x1000, scoped, tag = 'scratch operand']
  %s0 = inlined_call_operand.hbm [shape: f32[8,128], index: 0, kind: input, shape index: {}]
  %s1 = inlined_call_operand.hbm [shape: f32[128,128], index: 1, kind: input, shape index: {}]
  %s2 = inlined_call_operand.vmem [shape: f32[1,128], index: 2, kind: input, shape index: {}]
  %s3 = inlined_call_operand.hbm [shape: f32[128,128], index: 3, kind: input, shape index: {}]
  %s4 = inlined_call_operand.vmem [shape: f32[1,128], index: 4, kind: input, shape index: {}]
  %s5 = inlined_call_operand.hbm [shape: f32[8,128], index: 5, kind: output, shape index: {}]
  %s6 = sld [smem:[#allocation0]]
  $region50: #{tpu_custom_call.1} parent=0
    _
  %s8 = ssub.s32 1, %s6
  %s9 = scalar_select 0, %s8, %s6
  $region1: #{tpu_custom_call.1} parent=0
    #allocation3 [shape = 'u8[4096]{0}', space=vmem, size = 0x1000, scoped, tag = 'input window, operand 0, single buffered']
    #allocation4 [shape = 's32[1]{0}', space=sflag, size = 0x4, scoped, tag = 'scoped memory for tpu_custom_call.1']
    #allocation5 [shape = 's32[1]{0}', space=sflag, size = 0x4, scoped, tag = 'scoped memory for tpu_custom_call.1']
    #allocation6 [shape = 'u8[65536]{0}', space=vmem, size = 0x10000, scoped, tag = 'input window, operand 1, single buffered']
    #allocation7 [shape = 's32[1]{0}', space=sflag, size = 0x4, scoped, tag = 'scoped memory for tpu_custom_call.1']
    #allocation8 [shape = 'u8[65536]{0}', space=vmem, size = 0x10000, scoped, tag = 'input window, operand 3, single buffered']
    #allocation9 [shape = 'u8[4096]{0}', space=vmem, size = 0x1000, scoped, tag = 'output window, operand 0, single buffered']
    %10 = vsyncpa [#allocation4], 0
    %11 = vsyncpa [#allocation7], 0
    %12 = vsyncpa [#allocation5], 0
    // Predicated region
    $region2: #{tpu_custom_call.1} parent=1 // pred_check
      _
    $region3: #{tpu_custom_call.1} parent=1 // pred_check_branch
      %14 = sbr.rel (0) target = $region5
    $region4: #{tpu_custom_call.1} parent=1 // pred_region
      %16 = vsyncadd [#allocation4], 0
      %s18 = sshll.u32 %s0, 4
      %s19 = int_to_ptr.hbm [resolvable:$true] %s18
      %s20 = sshll.u32 [#allocation3], 4
      %s21 = int_to_ptr.vmem [resolvable:$true] %s20
      %23 = dma.hbm_to_vmem [thread:$0]  %s19, 128, %s21, [#allocation4]
    $region5: #{tpu_custom_call.1} parent=1 // pred_fallthru
      _
    // Predicated region
    $region6: #{tpu_custom_call.1} parent=1 // pred_check
      _
    $region7: #{tpu_custom_call.1} parent=1 // pred_check_branch
      %25 = sbr.rel (0) target = $region9
    $region8: #{tpu_custom_call.1} parent=1 // pred_region
      %27 = vsyncadd [#allocation7], 0
      %s28 = sshll.u32 %s1, 4
      %s29 = int_to_ptr.hbm [resolvable:$true] %s28
      %s30 = sshll.u32 [#allocation6], 4
      %s31 = int_to_ptr.vmem [resolvable:$true] %s30
      %36 = dma.hbm_to_vmem [thread:$0]  %s29, 2048, %s31, [#allocation7], 128, 128, 8
    $region9: #{tpu_custom_call.1} parent=1 // pred_fallthru
      _
    // Predicated region
    $region10: #{tpu_custom_call.1} parent=1 // pred_check
      _
    $region11: #{tpu_custom_call.1} parent=1 // pred_check_branch
      %38 = sbr.rel (0) target = $region13
    $region12: #{tpu_custom_call.1} parent=1 // pred_region
      _
    $region13: #{tpu_custom_call.1} parent=1 // pred_fallthru
      _
    // Predicated region
    $region14: #{tpu_custom_call.1} parent=1 // pred_check
      _
    $region15: #{tpu_custom_call.1} parent=1 // pred_check_branch
      %40 = sbr.rel (0) target = $region17
    $region16: #{tpu_custom_call.1} parent=1 // pred_region
      %42 = vsyncadd [#allocation7], 0
      %s43 = sshll.u32 %s3, 4
      %s44 = int_to_ptr.hbm [resolvable:$true] %s43
      %s45 = sshll.u32 [#allocation8], 4
      %s46 = int_to_ptr.vmem [resolvable:$true] %s45
      %51 = dma.hbm_to_vmem [thread:$0]  %s44, 2048, %s46, [#allocation7], 128, 128, 8
    $region17: #{tpu_custom_call.1} parent=1 // pred_fallthru
      _
    // Predicated region
    $region18: #{tpu_custom_call.1} parent=1 // pred_check
      _
    $region19: #{tpu_custom_call.1} parent=1 // pred_check_branch
      %53 = sbr.rel (0) target = $region21
    $region20: #{tpu_custom_call.1} parent=1 // pred_region
      _
    $region21: #{tpu_custom_call.1} parent=1 // pred_fallthru
      _
    // Predicated region
    $region22: #{tpu_custom_call.1} parent=1 // pred_check
      _
    $region23: #{tpu_custom_call.1} parent=1 // pred_check_branch
      %55 = sbr.rel (0) target = $region25
    $region24: #{tpu_custom_call.1} parent=1 // pred_region
      %57 = dma.done [#allocation4], 128
    $region25: #{tpu_custom_call.1} parent=1 // pred_fallthru
      _
    // Predicated region
    $region26: #{tpu_custom_call.1} parent=1 // pred_check
      _
    $region27: #{tpu_custom_call.1} parent=1 // pred_check_branch
      %59 = sbr.rel (0) target = $region29
    $region28: #{tpu_custom_call.1} parent=1 // pred_region
      %61 = dma.done [#allocation7], 2048
    $region29: #{tpu_custom_call.1} parent=1 // pred_fallthru
      _
    // Predicated region
    $region30: #{tpu_custom_call.1} parent=1 // pred_check
      _
    $region31: #{tpu_custom_call.1} parent=1 // pred_check_branch
      %63 = sbr.rel (0) target = $region33
    $region32: #{tpu_custom_call.1} parent=1 // pred_region
      %65 = dma.done [#allocation7], 2048
    $region33: #{tpu_custom_call.1} parent=1 // pred_fallthru
      _
    %p66 = scmp.eq.s32.totalorder 0, 0
    // Predicated region
    $region34: #{tpu_custom_call.1} parent=1 // pred_check
      %p67 = pneg %p66
    $region35: #{tpu_custom_call.1} parent=1 // pred_check_branch
      %69 = sbr.rel (%p67) target = $region37
    $region36: #{tpu_custom_call.1} parent=1 // pred_region
      %70 = vst [vmem:[#allocation2] sm:$0xff] 0.0
    $region37: #{tpu_custom_call.1} parent=1 // pred_fallthru
      _
    %v71 = vld [vmem:[#allocation2] sm:$0xff]
    %v72 = vld [vmem:[#allocation3] sm:$0xff]
    %v73 = vld [vmem:[#allocation6] sm:$0xff]
    %v74 = vld [vmem:[#allocation6 + $0x8] sm:$0xff]
    %v75 = vld [vmem:[#allocation6 + $0x10] sm:$0xff]
    %v76 = vld [vmem:[#allocation6 + $0x18] sm:$0xff]
    %v77 = vld [vmem:[#allocation6 + $0x20] sm:$0xff]
    %v78 = vld [vmem:[#allocation6 + $0x28] sm:$0xff]
    %v79 = vld [vmem:[#allocation6 + $0x30] sm:$0xff]
    %v80 = vld [vmem:[#allocation6 + $0x38] sm:$0xff]
    %v81 = vld [vmem:[#allocation6 + $0x40] sm:$0xff]
    %v82 = vld [vmem:[#allocation6 + $0x48] sm:$0xff]
    %v83 = vld [vmem:[#allocation6 + $0x50] sm:$0xff]
    %v84 = vld [vmem:[#allocation6 + $0x58] sm:$0xff]
    %v85 = vld [vmem:[#allocation6 + $0x60] sm:$0xff]
    %v86 = vld [vmem:[#allocation6 + $0x68] sm:$0xff]
    %v87 = vld [vmem:[#allocation6 + $0x70] sm:$0xff]
    %v88 = vld [vmem:[#allocation6 + $0x78] sm:$0xff]
    %89 = vmatpush.msra.mxu0 %v88
    %90 = vmatpush.msra.mxu0 %v87
    %91 = vmatpush.msra.mxu0 %v86
    %92 = vmatpush.msra.mxu0 %v85
    %93 = vmatpush.msra.mxu0 %v84
    %94 = vmatpush.msra.mxu0 %v83
    %95 = vmatpush.msra.mxu0 %v82
    %96 = vmatpush.msra.mxu0 %v81
    %97 = vmatpush.msra.mxu0 %v80
    %98 = vmatpush.msra.mxu0 %v79
    %99 = vmatpush.msra.mxu0 %v78
    %100 = vmatpush.msra.mxu0 %v77
    %101 = vmatpush.msra.mxu0 %v76
    %102 = vmatpush.msra.mxu0 %v75
    %103 = vmatpush.msra.mxu0 %v74
    %104 = vmatpush.msra.mxu0 %v73
    %105 = vmatmul.f32.gmra.mxu0 %v72
    %v106 = vpop.f32.mrf.mxu0
    %v107 = vadd.f32 0.0, %v106
    %108 = vdwg.mxu0
    %v109 = vadd.f32 %v71, %v107
    %110 = vst [vmem:[#allocation2] sm:$0xff] %v109
    // Predicated region
    $region38: #{tpu_custom_call.1} parent=1 // pred_check
      %p111 = pneg %p66
    $region39: #{tpu_custom_call.1} parent=1 // pred_check_branch
      %113 = sbr.rel (%p111) target = $region41
    $region40: #{tpu_custom_call.1} parent=1 // pred_region
      %v114 = vld [vmem:[#allocation2] sm:$0xff]
      %v115 = vld [vmem:[%s2] sm:$0x1]
      %v117 = vperm.slane %v115, 0
      %v119 = vadd.f32 %v114, %v117
      %v120 = vmax.f32 %v119, 0.0
      %v121 = vld [vmem:[#allocation8] sm:$0xff]
      %v122 = vld [vmem:[#allocation8 + $0x8] sm:$0xff]
      %v123 = vld [vmem:[#allocation8 + $0x10] sm:$0xff]
      %v124 = vld [vmem:[#allocation8 + $0x18] sm:$0xff]
      %v125 = vld [vmem:[#allocation8 + $0x20] sm:$0xff]
      %v126 = vld [vmem:[#allocation8 + $0x28] sm:$0xff]
      %v127 = vld [vmem:[#allocation8 + $0x30] sm:$0xff]
      %v128 = vld [vmem:[#allocation8 + $0x38] sm:$0xff]
      %v129 = vld [vmem:[#allocation8 + $0x40] sm:$0xff]
      %v130 = vld [vmem:[#allocation8 + $0x48] sm:$0xff]
      %v131 = vld [vmem:[#allocation8 + $0x50] sm:$0xff]
      %v132 = vld [vmem:[#allocation8 + $0x58] sm:$0xff]
      %v133 = vld [vmem:[#allocation8 + $0x60] sm:$0xff]
      %v134 = vld [vmem:[#allocation8 + $0x68] sm:$0xff]
      %v135 = vld [vmem:[#allocation8 + $0x70] sm:$0xff]
      %v136 = vld [vmem:[#allocation8 + $0x78] sm:$0xff]
      %v137 = vld [vmem:[%s4] sm:$0x1]
      %v139 = vperm.slane %v137, 0
      %141 = vmatpush.msra.mxu0 %v136
      %142 = vmatpush.msra.mxu0 %v135
      %143 = vmatpush.msra.mxu0 %v134
      %144 = vmatpush.msra.mxu0 %v133
      %145 = vmatpush.msra.mxu0 %v132
      %146 = vmatpush.msra.mxu0 %v131
      %147 = vmatpush.msra.mxu0 %v130
      %148 = vmatpush.msra.mxu0 %v129
      %149 = vmatpush.msra.mxu0 %v128
      %150 = vmatpush.msra.mxu0 %v127
      %151 = vmatpush.msra.mxu0 %v126
      %152 = vmatpush.msra.mxu0 %v125
      %153 = vmatpush.msra.mxu0 %v124
      %154 = vmatpush.msra.mxu0 %v123
      %155 = vmatpush.msra.mxu0 %v122
      %156 = vmatpush.msra.mxu0 %v121
      %157 = vmatmul.f32.gmra.mxu0 %v120
      %v158 = vpop.f32.mrf.mxu0
      %v159 = vadd.f32 %v139, %v158
      %160 = vdwg.mxu0
      %v161 = vmax.f32 %v159, 0.0
      %162 = vst [vmem:[#allocation9] sm:$0xff] %v161
    $region41: #{tpu_custom_call.1} parent=1 // pred_fallthru
      _
    // Predicated region
    $region42: #{tpu_custom_call.1} parent=1 // pred_check
      _
    $region43: #{tpu_custom_call.1} parent=1 // pred_check_branch
      %164 = sbr.rel (0) target = $region45
    $region44: #{tpu_custom_call.1} parent=1 // pred_region
      %166 = vsyncadd [#allocation5], 0
      %s168 = sshll.u32 [#allocation9], 4
      %s169 = int_to_ptr.vmem [resolvable:$true] %s168
      %s170 = sshll.u32 %s5, 4
      %s171 = int_to_ptr.hbm [resolvable:$true] %s170
      %173 = dma.vmem_to_hbm [thread:$0]  %s169, 128, %s171, [#allocation5]
    $region45: #{tpu_custom_call.1} parent=1 // pred_fallthru
      _
    // Predicated region
    $region46: #{tpu_custom_call.1} parent=1 // pred_check
      _
    $region47: #{tpu_custom_call.1} parent=1 // pred_check_branch
      %175 = sbr.rel (0) target = $region49
    $region48: #{tpu_custom_call.1} parent=1 // pred_region
      %177 = dma.done [#allocation5], 128
    $region49: #{tpu_custom_call.1} parent=1 // pred_fallthru
      _
    %178 = vsyncpa [#allocation4], 1
    %179 = vsyncpa [#allocation7], 1
    %180 = vsyncpa [#allocation5], 1

</llo_original>
